<compile_context>
chip_gen: v7x
topology: tpu7x:2x2x1
jax: 0.10.0
libtpu: 0.0.40
codegen_flags: <defaults>
</compile_context>

<pallas_src>
import functools

import jax
import jax.numpy as jnp
from jax.experimental import pallas as pl
from jax.experimental.pallas import tpu as pltpu


def _round_up(x, m):
    return (x + m - 1) // m * m


# ----------------------------- Pallas kernels ------------------------------

def _segment_sum_kernel(seg_ref, x_ref, o_ref, sum_sc, cnt_sc, *, divide):
    """Accumulate one_hot(batch) @ x over node tiles; finalize mean/add on last tile."""
    i = pl.program_id(0)            # graph-row tile (parallel)
    k = pl.program_id(1)            # node tile (reduction, last grid axis)

    @pl.when(k == 0)
    def _():
        sum_sc[...] = jnp.zeros_like(sum_sc)
        cnt_sc[...] = jnp.zeros_like(cnt_sc)

    seg = seg_ref[...]                                            # [1, TN] int32
    tb = o_ref.shape[0]
    gids = jax.lax.broadcasted_iota(jnp.int32, (tb, seg.shape[1]), 0) + i * tb
    onehot = (gids == seg).astype(jnp.float32)                    # [TB, TN]

    sum_sc[...] += jnp.dot(onehot, x_ref[...],
                           preferred_element_type=jnp.float32)    # MXU
    cnt_sc[...] += jnp.sum(onehot, axis=1, keepdims=True)         # [TB, 1]

    @pl.when(k == pl.num_programs(1) - 1)
    def _():
        if divide:
            o_ref[...] = sum_sc[...] / jnp.maximum(cnt_sc[...], 1.0)
        else:
            o_ref[...] = sum_sc[...]


def _segment_max_kernel(seg_ref, x_ref, o_ref):
    seg = seg_ref[...]              # [Np, 1] int32 (padded nodes carry id -1)
    x = x_ref[...]                  # [Np, Dp] f32
    neg = jnp.finfo(jnp.float32).min
    rows = []
    for g in range(o_ref.shape[0]):                 # static unroll over padded graphs
        masked = jnp.where(seg == g, x, neg)        # [Np, Dp]
        rows.append(jnp.max(masked, axis=0, keepdims=True))
    o_ref[...] = jnp.concatenate(rows, axis=0)      # single lane-dense full-block store


# ------------------------------- wrapper ------------------------------------

@functools.partial(jax.jit, static_argnames=("num_graphs", "pooling_type"))
def graph_pooling(x, batch, num_graphs, pooling_type="mean"):
    """GraphPooling.forward: pool node features to graph features [num_graphs, D]."""
    n, d = x.shape
    n_p = _round_up(n, 128)         # node axis is the lane axis of the one-hot matrix
    d_p = _round_up(d, 128)         # lane-dense feature/output axis

    x_p = jnp.zeros((n_p, d_p), jnp.float32).at[:n, :d].set(x.astype(jnp.float32))
    batch_p = jnp.full((n_p,), -1, jnp.int32).at[:n].set(batch.astype(jnp.int32))

    if pooling_type in ("mean", "add"):
        # graph-row tile / node reduction tile (re-derived for VMEM when scaled)
        if num_graphs <= 128:
            tb = _round_up(num_graphs, 8)
            b_p = tb
        else:
            tb = 128
            b_p = _round_up(num_graphs, 128)
        tn = n_p if n_p <= 512 else 512
        n_pad = _round_up(n_p, tn)
        if n_pad != n_p:
            x_p = jnp.pad(x_p, ((0, n_pad - n_p), (0, 0)))
            batch_p = jnp.pad(batch_p, (0, n_pad - n_p), constant_values=-1)
            n_p = n_pad
        seg_row = batch_p.reshape(1, n_p)

        out = pl.pallas_call(
            functools.partial(_segment_sum_kernel,
                              divide=(pooling_type == "mean")),
            out_shape=jax.ShapeDtypeStruct((b_p, d_p), jnp.float32),
            grid=(b_p // tb, n_p // tn),
            in_specs=[
                pl.BlockSpec((1, tn), lambda i, k: (0, k)),
                pl.BlockSpec((tn, d_p), lambda i, k: (k, 0)),
            ],
            out_specs=pl.BlockSpec((tb, d_p), lambda i, k: (i, 0)),
            scratch_shapes=[
                pltpu.VMEM((tb, d_p), jnp.float32),   # segment sums accumulator
                pltpu.VMEM((tb, 1), jnp.float32),     # segment counts accumulator
            ],
            compiler_params=pltpu.CompilerParams(
                dimension_semantics=("parallel", "arbitrary")),
        )(seg_row, x_p)
        return out[:num_graphs, :d]

    if pooling_type == "max":
        b_p = _round_up(num_graphs, 8)
        seg_col = batch_p.reshape(n_p, 1)
        out = pl.pallas_call(
            _segment_max_kernel,
            out_shape=jax.ShapeDtypeStruct((b_p, d_p), jnp.float32),
            grid=(1,),
            in_specs=[
                pl.BlockSpec((n_p, 1), lambda i: (0, 0)),
                pl.BlockSpec((n_p, d_p), lambda i: (0, 0)),
            ],
            out_specs=pl.BlockSpec((b_p, d_p), lambda i: (0, 0)),
        )(seg_col, x_p)
        return out[:num_graphs, :d]

    # TODO(synk): 'attention' pooling requires a lazily-created nn.Linear(feat_dim, 1)
    # parameter (stateful module init in the reference); not translated here.
    raise ValueError(f"unsupported pooling_type: {pooling_type}")


# --------------------------- pure-JAX reference ------------------------------

def _ref_pool(x, batch, num_graphs, pooling_type):
    if pooling_type == "add":
        return jax.ops.segment_sum(x, batch, num_segments=num_graphs)
    if pooling_type == "mean":
        s = jax.ops.segment_sum(x, batch, num_segments=num_graphs)
        c = jax.ops.segment_sum(jnp.ones((x.shape[0], 1), x.dtype), batch,
                                num_segments=num_graphs)
        return s / jnp.maximum(c, 1.0)
    if pooling_type == "max":
        return jax.ops.segment_max(x, batch, num_segments=num_graphs)
    raise ValueError(pooling_type)


# --------------------------------- main --------------------------------------

if __name__ == "__main__":
    key = jax.random.PRNGKey(0)
    num_nodes, feat_dim, batch_size = 16, 32, 2

    x = jax.random.normal(key, (num_nodes, feat_dim), jnp.float32)
    # sorted PyG-style batch vector: graph 0 has 7 nodes, graph 1 has 9 nodes
    batch = jnp.concatenate(
        [jnp.zeros((7,), jnp.int32), jnp.ones((9,), jnp.int32)])

    # default pooling type of the module: 'mean'
    y_mean = graph_pooling(x, batch, batch_size, "mean")
    jax.block_until_ready(y_mean)
    assert y_mean.shape == (batch_size, feat_dim)
    assert jnp.allclose(y_mean, _ref_pool(x, batch, batch_size, "mean"),
                        atol=1e-5, rtol=1e-5)

    # also exercise the other dense pooling variants
    y_add = graph_pooling(x, batch, batch_size, "add")
    y_max = graph_pooling(x, batch, batch_size, "max")
    jax.block_until_ready((y_add, y_max))
    assert jnp.allclose(y_add, _ref_pool(x, batch, batch_size, "add"),
                        atol=1e-5, rtol=1e-5)
    assert jnp.allclose(y_max, _ref_pool(x, batch, batch_size, "max"),
                        atol=1e-5, rtol=1e-5)

    print("KERNEL_OK")
</pallas_src>

<mosaic_0001>
module attributes {stable_mosaic.version = 11 : i64} {
  func.func @_segment_sum_kernel(%arg0: i32, %arg1: i32, %arg2: memref<1x128xi32, #tpu.memory_space<vmem>>, %arg3: memref<128x128xf32, #tpu.memory_space<vmem>>, %arg4: memref<8x128xf32, #tpu.memory_space<vmem>>, %arg5: memref<8x128xf32, #tpu.memory_space<vmem>>, %arg6: memref<8x1xf32, #tpu.memory_space<vmem>>) attributes {dimension_semantics = [#tpu.dimension_semantics<parallel>, #tpu.dimension_semantics<arbitrary>], iteration_bounds = array<i64: 1, 1>, scalar_prefetch = 0 : i64, scratch_operands = 2 : i64, tpu.core_type = #tpu.core_type<tc>, window_params = [{transform_indices = @transform_0, window_bounds = array<i64: 1, 128>}, {transform_indices = @transform_1, window_bounds = array<i64: 128, 128>}, {transform_indices = @transform_2, window_bounds = array<i64: 8, 128>}]} {
    %c0_i32 = arith.constant 0 : i32
    %0 = arith.cmpi eq, %arg1, %c0_i32 : i32
    %1 = arith.extui %0 : i1 to i32
    %c0_i32_0 = arith.constant 0 : i32
    %2 = arith.cmpi ne, %1, %c0_i32_0 : i32
    scf.if %2 {
      %cst_15 = arith.constant 0.000000e+00 : f32
      %25 = vector.broadcast %cst_15 : f32 to vector<8x128xf32>
      %c0_16 = arith.constant 0 : index
      %c0_17 = arith.constant 0 : index
      %26 = vector.load %arg5[%c0_16, %c0_17] : memref<8x128xf32, #tpu.memory_space<vmem>>, vector<8x128xf32>
      tpu.vector_store %arg5[%c0_16, %c0_17], %25 {strides = array<i32>} : memref<8x128xf32, #tpu.memory_space<vmem>>, vector<8x128xf32>,
      %cst_18 = arith.constant 0.000000e+00 : f32
      %27 = vector.broadcast %cst_18 : f32 to vector<8x1xf32>
      %c0_19 = arith.constant 0 : index
      %c0_20 = arith.constant 0 : index
      %28 = vector.load %arg6[%c0_19, %c0_20] : memref<8x1xf32, #tpu.memory_space<vmem>>, vector<8x1xf32>
      tpu.vector_store %arg6[%c0_19, %c0_20], %27 {strides = array<i32>} : memref<8x1xf32, #tpu.memory_space<vmem>>, vector<8x1xf32>,
    } else {
    }
    %c0 = arith.constant 0 : index
    %c0_1 = arith.constant 0 : index
    %3 = vector.load %arg2[%c0, %c0_1] : memref<1x128xi32, #tpu.memory_space<vmem>>, vector<1x128xi32>
    %4 = tpu.iota {dimensions = array<i32: 0>} : vector<8x128xi32>
    %c8_i32 = arith.constant 8 : i32
    %5 = arith.muli %arg0, %c8_i32 : i32
    %6 = vector.broadcast %5 : i32 to vector<8x128xi32>
    %7 = arith.addi %4, %6 : vector<8x128xi32>
    %8 = vector.broadcast %3 : vector<1x128xi32> to vector<8x128xi32>
    %9 = arith.cmpi eq, %7, %8 : vector<8x128xi32>
    %10 = arith.extui %9 : vector<8x128xi1> to vector<8x128xi32>
    %11 = arith.sitofp %10 : vector<8x128xi32> to vector<8x128xf32>
    %c0_2 = arith.constant 0 : index
    %c0_3 = arith.constant 0 : index
    %12 = vector.load %arg5[%c0_2, %c0_3] : memref<8x128xf32, #tpu.memory_space<vmem>>, vector<8x128xf32>
    %c0_4 = arith.constant 0 : index
    %c0_5 = arith.constant 0 : index
    %13 = vector.load %arg3[%c0_4, %c0_5] : memref<128x128xf32, #tpu.memory_space<vmem>>, vector<128x128xf32>
    %cst = arith.constant dense<0.000000e+00> : vector<8x128xf32>
    %14 = tpu.matmul %11, %13, %cst {dimension_numbers = #tpu.dot_dimension_numbers<[1], [0], [0], [1], [0, 0, 1, 1], [], []>} : vector<8x128xf32>, vector<128x128xf32>, vector<8x128xf32> -> vector<8x128xf32>
    %15 = arith.addf %12, %14 : vector<8x128xf32>
    %c0_6 = arith.constant 0 : index
    %c0_7 = arith.constant 0 : index
    %16 = vector.load %arg5[%c0_6, %c0_7] : memref<8x128xf32, #tpu.memory_space<vmem>>, vector<8x128xf32>
    tpu.vector_store %arg5[%c0_6, %c0_7], %15 {strides = array<i32>} : memref<8x128xf32, #tpu.memory_space<vmem>>, vector<8x128xf32>,
    %c0_8 = arith.constant 0 : index
    %c0_9 = arith.constant 0 : index
    %17 = vector.load %arg6[%c0_8, %c0_9] : memref<8x1xf32, #tpu.memory_space<vmem>>, vector<8x1xf32>
    %cst_10 = arith.constant dense<0.000000e+00> : vector<8xf32>
    %18 = vector.multi_reduction <add>, %11, %cst_10 [1] : vector<8x128xf32> to vector<8xf32>
    %19 = vector.shape_cast %18 : vector<8xf32> to vector<8x1xf32>
    %20 = arith.addf %17, %19 : vector<8x1xf32>
    %c0_11 = arith.constant 0 : index
    %c0_12 = arith.constant 0 : index
    %21 = vector.load %arg6[%c0_11, %c0_12] : memref<8x1xf32, #tpu.memory_space<vmem>>, vector<8x1xf32>
    tpu.vector_store %arg6[%c0_11, %c0_12], %20 {strides = array<i32>} : memref<8x1xf32, #tpu.memory_space<vmem>>, vector<8x1xf32>,
    %c0_i32_13 = arith.constant 0 : i32
    %22 = arith.cmpi eq, %arg1, %c0_i32_13 : i32
    %23 = arith.extui %22 : i1 to i32
    %c0_i32_14 = arith.constant 0 : i32
    %24 = arith.cmpi ne, %23, %c0_i32_14 : i32
    scf.if %24 {
      %c0_15 = arith.constant 0 : index
      %c0_16 = arith.constant 0 : index
      %25 = vector.load %arg5[%c0_15, %c0_16] : memref<8x128xf32, #tpu.memory_space<vmem>>, vector<8x128xf32>
      %c0_17 = arith.constant 0 : index
      %c0_18 = arith.constant 0 : index
      %26 = vector.load %arg6[%c0_17, %c0_18] : memref<8x1xf32, #tpu.memory_space<vmem>>, vector<8x1xf32>
      %cst_19 = arith.constant 1.000000e+00 : f32
      %27 = vector.broadcast %cst_19 : f32 to vector<8x1xf32>
      %28 = arith.maximumf %26, %27 : vector<8x1xf32>
      %29 = vector.broadcast %28 : vector<8x1xf32> to vector<8x128xf32>
      %30 = arith.divf %25, %29 : vector<8x128xf32>
      %c0_20 = arith.constant 0 : index
      %c0_21 = arith.constant 0 : index
      %31 = vector.load %arg4[%c0_20, %c0_21] : memref<8x128xf32, #tpu.memory_space<vmem>>, vector<8x128xf32>
      tpu.vector_store %arg4[%c0_20, %c0_21], %30 {strides = array<i32>} : memref<8x128xf32, #tpu.memory_space<vmem>>, vector<8x128xf32>,
    } else {
    }
    return
  }
  func.func @transform_0(%arg0: i32, %arg1: i32) -> (i32, i32) {
    %c0_i32 = arith.constant 0 : i32
    %c0_i32_0 = arith.constant 0 : i32
    return %c0_i32, %arg1 : i32, i32
  }
  func.func @transform_1(%arg0: i32, %arg1: i32) -> (i32, i32) {
    %c0_i32 = arith.constant 0 : i32
    %c0_i32_0 = arith.constant 0 : i32
    return %arg1, %c0_i32 : i32, i32
  }
  func.func @transform_2(%arg0: i32, %arg1: i32) -> (i32, i32) {
    %c0_i32 = arith.constant 0 : i32
    %c0_i32_0 = arith.constant 0 : i32
    return %arg0, %c0_i32 : i32, i32
  }
}

</mosaic_0001>

<llo_original>
// kernel: graph_pooling.1
$region0: #{graph_pooling.1}
  #allocation0 [shape = 'u32[]', space=smem, size = 0x4, offset = 0x4, fixed_abs, tag = 'smem constant byte address 0x4 - core index']
  #allocation1 [shape = 'u32[144,128]{1,0:T(1,128)}', space=vmem, size = 0x12000, scoped, tag = 'internal scratch']
  #allocation2 [shape = 'f32[8,128]{1,0:T(8,128)}', space=vmem, size = 0x1000, scoped, tag = 'scratch operand']
  #allocation3 [shape = 'f32[8,1]{1,0:T(8,128)}', space=vmem, size = 0x1000, scoped, tag = 'scratch operand']
  %s0 = inlined_call_operand.vmem [shape: s32[1,128], index: 0, kind: input, shape index: {}]
  %s1 = inlined_call_operand.vmem [shape: f32[128,128], index: 1, kind: input, shape index: {}]
  %s2 = inlined_call_operand.vmem [shape: f32[8,128], index: 2, kind: output, shape index: {}]
  %s3 = sld [smem:[#allocation0]]
  $region26: #{graph_pooling.1} parent=0
    _
  %s5 = ssub.s32 1, %s3
  %s6 = scalar_select 0, %s5, %s3
  // Predicated region
  $region2: #{graph_pooling.1} parent=0 // pred_check
    _
  $region3: #{graph_pooling.1} parent=0 // pred_check_branch
    %8 = sbr.rel (0) target = $region5
  $region4: #{graph_pooling.1} parent=0 // pred_region
    _
  $region5: #{graph_pooling.1} parent=0 // pred_fallthru
    _
  // Predicated region
  $region6: #{graph_pooling.1} parent=0 // pred_check
    _
  $region7: #{graph_pooling.1} parent=0 // pred_check_branch
    %10 = sbr.rel (0) target = $region9
  $region8: #{graph_pooling.1} parent=0 // pred_region
    _
  $region9: #{graph_pooling.1} parent=0 // pred_fallthru
    _
  %p11 = scmp.eq.s32.totalorder 0, 0
  // Predicated region
  $region10: #{graph_pooling.1} parent=0 // pred_check
    %p12 = pneg %p11
  $region11: #{graph_pooling.1} parent=0 // pred_check_branch
    %14 = sbr.rel (%p12) target = $region13
  $region12: #{graph_pooling.1} parent=0 // pred_region
    %15 = vst [vmem:[#allocation2] sm:$0xff] 0.0
    %vm16 = vcmask 7168
    %17 = vst.msk [vmem:[#allocation3] sm:$0xff] %vm16, 0.0
  $region13: #{graph_pooling.1} parent=0 // pred_fallthru
    _
  %v18 = vld [vmem:[%s0] sm:$0x1]
  %v19 = vlaneseq
  %v20 = vshrl.u32 %v19, 7
  %s21 = smul.u32 0, 8
  %v22 = vstv %s21
  %v23 = vadd.s32 %v20, %v22
  %v24 = vlaneseq
  %v25 = vshrl.u32 %v24, 7
  %v26 = vsub.s32 0, %v25
  %v27 = vrot.slane %v18, %v26
  %vm28 = vcmp.eq.s32.totalorder %v23, %v27
  %v29 = vsel %vm28, 1, 0
  %v30 = vcvt.s32.f32 %v29
  %v31 = vld [vmem:[#allocation2] sm:$0xff]
  %v32 = vld [vmem:[%s1] sm:$0xff]
  %v33 = vld [vmem:[%s1 + $0x8] sm:$0xff]
  %v34 = vld [vmem:[%s1 + $0x10] sm:$0xff]
  %v35 = vld [vmem:[%s1 + $0x18] sm:$0xff]
  %v36 = vld [vmem:[%s1 + $0x20] sm:$0xff]
  %v37 = vld [vmem:[%s1 + $0x28] sm:$0xff]
  %v38 = vld [vmem:[%s1 + $0x30] sm:$0xff]
  %v39 = vld [vmem:[%s1 + $0x38] sm:$0xff]
  %v40 = vld [vmem:[%s1 + $0x40] sm:$0xff]
  %v41 = vld [vmem:[%s1 + $0x48] sm:$0xff]
  %v42 = vld [vmem:[%s1 + $0x50] sm:$0xff]
  %v43 = vld [vmem:[%s1 + $0x58] sm:$0xff]
  %v44 = vld [vmem:[%s1 + $0x60] sm:$0xff]
  %v45 = vld [vmem:[%s1 + $0x68] sm:$0xff]
  %v46 = vld [vmem:[%s1 + $0x70] sm:$0xff]
  %v47 = vld [vmem:[%s1 + $0x78] sm:$0xff]
  %48 = vmatprep.subr.mxu0 0.0
  %49 = vmatpush1.msra.mxu0 %v32
  %50 = vmatprep.subr.mxu0 0.0
  %51 = vmatpush1.msra.mxu0 %v33
  %52 = vmatprep.subr.mxu0 0.0
  %53 = vmatpush1.msra.mxu0 %v34
  %54 = vmatprep.subr.mxu0 0.0
  %55 = vmatpush1.msra.mxu0 %v35
  %56 = vmatprep.subr.mxu0 0.0
  %57 = vmatpush1.msra.mxu0 %v36
  %58 = vmatprep.subr.mxu0 0.0
  %59 = vmatpush1.msra.mxu0 %v37
  %60 = vmatprep.subr.mxu0 0.0
  %61 = vmatpush1.msra.mxu0 %v38
  %62 = vmatprep.subr.mxu0 0.0
  %63 = vmatpush1.msra.mxu0 %v39
  %64 = vmatprep.subr.mxu0 0.0
  %65 = vmatpush1.msra.mxu0 %v40
  %66 = vmatprep.subr.mxu0 0.0
  %67 = vmatpush1.msra.mxu0 %v41
  %68 = vmatprep.subr.mxu0 0.0
  %69 = vmatpush1.msra.mxu0 %v42
  %70 = vmatprep.subr.mxu0 0.0
  %71 = vmatpush1.msra.mxu0 %v43
  %72 = vmatprep.subr.mxu0 0.0
  %73 = vmatpush1.msra.mxu0 %v44
  %74 = vmatprep.subr.mxu0 0.0
  %75 = vmatpush1.msra.mxu0 %v45
  %76 = vmatprep.subr.mxu0 0.0
  %77 = vmatpush1.msra.mxu0 %v46
  %78 = vmatprep.subr.mxu0 0.0
  %79 = vmatpush1.msra.mxu0 %v47
  %80 = vmatprep.subr.mxu0 0.0
  %81 = vmatpush1.msra.mxu0 0.0
  %82 = vmatprep.subr.mxu0 0.0
  %83 = vmatpush1.msra.mxu0 0.0
  %84 = vmatprep.subr.mxu0 0.0
  %85 = vmatpush1.msra.mxu0 0.0
  %86 = vmatprep.subr.mxu0 0.0
  %87 = vmatpush1.msra.mxu0 0.0
  %88 = vmatprep.subr.mxu0 0.0
  %89 = vmatpush1.msra.mxu0 0.0
  %90 = vmatprep.subr.mxu0 0.0
  %91 = vmatpush1.msra.mxu0 0.0
  %92 = vmatprep.subr.mxu0 0.0
  %93 = vmatpush1.msra.mxu0 0.0
  %94 = vmatprep.subr.mxu0 0.0
  %95 = vmatpush1.msra.mxu0 0.0
  %96 = vmatprep.subr.mxu0 0.0
  %97 = vmatpush1.msra.mxu0 0.0
  %98 = vmatprep.subr.mxu0 0.0
  %99 = vmatpush1.msra.mxu0 0.0
  %100 = vmatprep.subr.mxu0 0.0
  %101 = vmatpush1.msra.mxu0 0.0
  %102 = vmatprep.subr.mxu0 0.0
  %103 = vmatpush1.msra.mxu0 0.0
  %104 = vmatprep.subr.mxu0 0.0
  %105 = vmatpush1.msra.mxu0 0.0
  %106 = vmatprep.subr.mxu0 0.0
  %107 = vmatpush1.msra.mxu0 0.0
  %108 = vmatprep.subr.mxu0 0.0
  %109 = vmatpush1.msra.mxu0 0.0
  %110 = vmatprep.subr.mxu0 0.0
  %111 = vmatpush1.msra.mxu0 0.0
  %112 = vmatprep.mubr.f32.mxu0 0.0
  %113 = vmatmul.mubr.f32.gmra.mrb[0].mxu0 %v30
  %v114 = vpop.f32.mrb[0].mxu0
  %v115 = vadd.f32 0.0, %v114
  %v116 = vpop.f32.mrb[0].mxu0
  %117 = vdwg.mxu0
  %v118 = vadd.f32 %v31, %v115
  %119 = vst [vmem:[#allocation2] sm:$0xff] %v118
  %v120 = vld [vmem:[#allocation3] sm:$0xff]
  %121 = vadd.xlane.f32.xlu0 %v30
  %v122 = vpop.xlane.xlu0 %121
  %v123 = vadd.f32 %v120, %v122
  %vm124 = vcmask 7168
  %125 = vst.msk [vmem:[#allocation3] sm:$0xff] %vm124, %v123
  // Predicated region
  $region14: #{graph_pooling.1} parent=0 // pred_check
    %p126 = pneg %p11
  $region15: #{graph_pooling.1} parent=0 // pred_check_branch
    %128 = sbr.rel (%p126) target = $region17
  $region16: #{graph_pooling.1} parent=0 // pred_region
    %v129 = vld [vmem:[#allocation2] sm:$0xff]
    %v130 = vld [vmem:[#allocation3] sm:$0xff]
    %v131 = vmax.f32 %v130, 1.0
    %133 = vset.pattern.permute.xlu0 0
    %134 = vperm.xlu0 %133, %v131
    %v135 = vpop.permute.xlu0 %134
    %v137 = vrcp.pop %v135
    %v138 = vmul.f32 %v129, %v137
    %139 = vst [vmem:[%s2] sm:$0xff] %v138
  $region17: #{graph_pooling.1} parent=0 // pred_fallthru
    _
  // Predicated region
  $region18: #{graph_pooling.1} parent=0 // pred_check
    _
  $region19: #{graph_pooling.1} parent=0 // pred_check_branch
    %141 = sbr.rel (0) target = $region21
  $region20: #{graph_pooling.1} parent=0 // pred_region
    _
  $region21: #{graph_pooling.1} parent=0 // pred_fallthru
    _
  // Predicated region
  $region22: #{graph_pooling.1} parent=0 // pred_check
    _
  $region23: #{graph_pooling.1} parent=0 // pred_check_branch
    %143 = sbr.rel (0) target = $region25
  $region24: #{graph_pooling.1} parent=0 // pred_region
    _
  $region25: #{graph_pooling.1} parent=0 // pred_fallthru
    _

</llo_original>
